<compile_context>
chip_gen: v7x
topology: tpu7x:2x2x1
jax: 0.10.0
libtpu: 0.0.40
codegen_flags: <defaults>
</compile_context>

<pallas_src>
import math

import jax
import jax.numpy as jnp
from jax.experimental import pallas as pl
from jax.experimental.pallas import tpu as pltpu


# -----------------------------------------------------------------------------
# Pallas kernel: one (TILE_L, E) row slab per grid step.
# -----------------------------------------------------------------------------
def node_mask_encoder_kernel(
    x_aa_ref,      # (1, T, A)
    d_feat_ref,    # (1, T, 6)
    code_ref,      # (1, T, 1) int32: 0=keep, 1=mask, 2=pad
    w_aa_ref,      # (A, E)   (transposed: Linear does x @ W^T)
    b_aa_ref,      # (1, E)
    w_d_ref,       # (6, E)
    mask_emb_ref,  # (1, E)
    pad_emb_ref,   # (1, E)
    pe_ref,        # (1, T, E)  (pe rows for this L-tile, b_d already folded in)
    out_ref,       # (1, T, E)
):
    x_aa = x_aa_ref[0]          # (T, A)
    d_feat = d_feat_ref[0]      # (T, 6)
    code = code_ref[0]          # (T, 1) int32

    # x = aa_in_proj(x_aa)
    x = jnp.dot(x_aa, w_aa_ref[...], preferred_element_type=jnp.float32) + b_aa_ref[...]

    # x[node_mask == 1] = mask_emb ; x[seq_mask == 0] = pad_emb  (pad overrides mask)
    x = jnp.where(code == 1, mask_emb_ref[...], x)
    x = jnp.where(code == 2, pad_emb_ref[...], x)

    # x_d = d_in_proj(d_feat)   (bias b_d folded into pe_ref)
    x_d = jnp.dot(d_feat, w_d_ref[...], preferred_element_type=jnp.float32)

    out_ref[0] = (x + x_d + pe_ref[0]).astype(out_ref.dtype)


def node_mask_encoder_pallas(x_aa, d_feat, node_mask, seq_mask, prep, *,
                             tile_l=512, out_dtype=jnp.float32):
    """prep = prepare_params(params, pe); returns (B, L, E) output."""
    B, L, A = x_aa.shape
    E = prep["w_aa_t"].shape[1]
    pe_eff = prep["pe_eff"]                       # (1, max_len, E)
    max_len = pe_eff.shape[1]
    assert L <= max_len, "sequence length exceeds positional-encoding table"

    # combined per-row code: 0 = keep, 1 = mask_emb, 2 = pad_emb (pad wins)
    code = jnp.where(seq_mask == 0, 2,
                     jnp.where(node_mask == 1, 1, 0)).astype(jnp.int32)[..., None]

    # Row tiling: TILE_L multiple of 8; sweepable per generation
    # (512 is safe for v7x's 64 MiB VMEM; v5e/v6e tolerate 1024-2048).
    L8 = ((L + 7) // 8) * 8
    TILE_L = min(tile_l, L8)
    n_lt = pl.cdiv(L, TILE_L)
    L_pad = n_lt * TILE_L

    def pad_rows(a):
        if a.shape[1] == L_pad:
            return a
        pad = ((0, 0), (0, L_pad - a.shape[1])) + ((0, 0),) * (a.ndim - 2)
        return jnp.pad(a, pad)

    x_aa_p = pad_rows(x_aa)
    d_feat_p = pad_rows(d_feat)
    code_p = pad_rows(code)
    # Pass the full pe table (no per-call slice copy) unless padding is needed.
    pe_in = pe_eff if L_pad <= max_len else jnp.pad(
        pe_eff, ((0, 0), (0, L_pad - max_len), (0, 0)))

    row3 = lambda shape: pl.BlockSpec(shape, lambda lt, b: (b, lt, 0))
    cst2 = lambda shape: pl.BlockSpec(shape, lambda lt, b: (0, 0))
    # pe index depends only on the L-tile index -> stays resident across the
    # (innermost, fastest-varying) batch axis; no re-DMA per batch step.
    pe_spec = pl.BlockSpec((1, TILE_L, E), lambda lt, b: (0, lt, 0))

    out = pl.pallas_call(
        node_mask_encoder_kernel,
        out_shape=jax.ShapeDtypeStruct((B, L_pad, E), out_dtype),
        grid_spec=pltpu.PrefetchScalarGridSpec(
            num_scalar_prefetch=0,
            grid=(n_lt, B),                       # batch innermost
            in_specs=[
                row3((1, TILE_L, A)),             # x_aa
                row3((1, TILE_L, 6)),             # d_feat
                row3((1, TILE_L, 1)),             # mask code
                cst2((A, E)),                     # w_aa_t
                cst2((1, E)),                     # b_aa
                cst2((6, E)),                     # w_d_t
                cst2((1, E)),                     # mask_emb
                cst2((1, E)),                     # pad_emb
                pe_spec,                          # pe (+ b_d)
            ],
            out_specs=row3((1, TILE_L, E)),
        ),
        compiler_params=pltpu.CompilerParams(
            dimension_semantics=("parallel", "parallel")),
    )(x_aa_p, d_feat_p, code_p,
      prep["w_aa_t"], prep["b_aa"], prep["w_d_t"],
      prep["mask_emb"], prep["pad_emb"], pe_in)

    return out[:, :L, :] if L_pad != L else out


# -----------------------------------------------------------------------------
# Glue: dihedral features + parameter / positional-encoding construction.
# -----------------------------------------------------------------------------
def cal_dihedrals(x_pos):
    # TODO(synk): cal_dihedrals is not defined in the provided module source;
    # this is a standard backbone (phi, psi, omega) -> sin/cos (6 feats) version.
    eps = 1e-8
    N, CA, C = x_pos[:, :, 0], x_pos[:, :, 1], x_pos[:, :, 2]

    def dihedral(p0, p1, p2, p3):
        b0 = p0 - p1
        b1 = p2 - p1
        b2 = p3 - p2
        b1n = b1 / (jnp.linalg.norm(b1, axis=-1, keepdims=True) + eps)
        v = b0 - jnp.sum(b0 * b1n, -1, keepdims=True) * b1n
        w = b2 - jnp.sum(b2 * b1n, -1, keepdims=True) * b1n
        xx = jnp.sum(v * w, -1)
        yy = jnp.sum(jnp.cross(b1n, v) * w, -1)
        return jnp.arctan2(yy, xx)

    phi = dihedral(C[:, :-1], N[:, 1:], CA[:, 1:], C[:, 1:])
    psi = dihedral(N[:, :-1], CA[:, :-1], C[:, :-1], N[:, 1:])
    omega = dihedral(CA[:, :-1], C[:, :-1], N[:, 1:], CA[:, 1:])
    zero = jnp.zeros((x_pos.shape[0], 1), dtype=x_pos.dtype)
    phi = jnp.concatenate([zero, phi], axis=1)
    psi = jnp.concatenate([psi, zero], axis=1)
    omega = jnp.concatenate([omega, zero], axis=1)
    ang = jnp.stack([phi, psi, omega], axis=-1)                       # (B, L, 3)
    return jnp.concatenate([jnp.sin(ang), jnp.cos(ang)], axis=-1).astype(jnp.float32)


def positional_encoding(emb_dim, max_len=1200):
    position = jnp.arange(max_len, dtype=jnp.float32)[:, None]
    div_term = jnp.exp(jnp.arange(0, emb_dim, 2, dtype=jnp.float32)
                       * (-math.log(10000.0) / emb_dim))
    pe = jnp.zeros((max_len, emb_dim), dtype=jnp.float32)
    pe = pe.at[:, 0::2].set(jnp.sin(position * div_term))
    pe = pe.at[:, 1::2].set(jnp.cos(position * div_term))
    return pe[None]  # (1, max_len, emb_dim)


def init_params(key, emb_dim, num_aa_types=20, num_d_feat=6):
    k1, k2, k3, k4, k5 = jax.random.split(key, 5)

    def xavier_uniform(k, fan_out, fan_in):
        bound = math.sqrt(6.0 / (fan_in + fan_out))
        return jax.random.uniform(k, (fan_out, fan_in), jnp.float32, -bound, bound)

    w_aa = xavier_uniform(k1, emb_dim, num_aa_types)        # torch Linear weight (out, in)
    w_d = xavier_uniform(k2, emb_dim, num_d_feat)
    b_aa = jax.random.uniform(k3, (emb_dim,), jnp.float32,
                              -1.0 / math.sqrt(num_aa_types), 1.0 / math.sqrt(num_aa_types))
    b_d = jax.random.uniform(k4, (emb_dim,), jnp.float32,
                             -1.0 / math.sqrt(num_d_feat), 1.0 / math.sqrt(num_d_feat))
    mask_emb = jax.random.normal(k5, (1, emb_dim), jnp.float32)  # nn.Embedding default N(0,1)
    pad_emb = jnp.zeros((1, emb_dim), jnp.float32)               # padding_idx=0 -> zero row
    return {
        "w_aa_t": w_aa.T,                     # (A, E) so kernel does x @ W^T
        "b_aa": b_aa[None, :],                # (1, E)
        "w_d_t": w_d.T,                       # (6, E)
        "b_d": b_d[None, :],                  # (1, E)
        "mask_emb": mask_emb,                 # (1, E)
        "pad_emb": pad_emb,                   # (1, E)
    }


def prepare_params(params, pe):
    """One-time prep: fold d_in_proj bias into the positional encoding table."""
    prep = dict(params)
    prep["pe_eff"] = (pe + params["b_d"]).astype(jnp.float32)   # (1, max_len, E)
    return prep


def reference(x_aa, d_feat, node_mask, seq_mask, params, pe):
    L = x_aa.shape[1]
    x = x_aa @ params["w_aa_t"] + params["b_aa"]
    x = jnp.where(node_mask[..., None] == 1, params["mask_emb"][0], x)
    x = jnp.where(seq_mask[..., None] == 0, params["pad_emb"][0], x)
    x_d = d_feat @ params["w_d_t"] + params["b_d"]
    return x + x_d + pe[:, :L, :]


# -----------------------------------------------------------------------------
if __name__ == "__main__":
    B, L, A, E = 2, 8, 20, 128
    key = jax.random.PRNGKey(0)
    k_aa, k_pos, k_nm, k_sm, k_par = jax.random.split(key, 5)

    # one-hot amino-acid features
    aa_ids = jax.random.randint(k_aa, (B, L), 0, A)
    x_aa = jax.nn.one_hot(aa_ids, A, dtype=jnp.float32)           # (B, L, 20)
    x_pos = jax.random.normal(k_pos, (B, L, 3, 3), jnp.float32)   # backbone N/CA/C
    node_mask = jax.random.randint(k_nm, (B, L), 0, 2)            # (B, L) in {0,1}
    seq_mask = jax.random.randint(k_sm, (B, L), 0, 2)             # (B, L) in {0,1}

    params = init_params(k_par, E, num_aa_types=A, num_d_feat=6)
    pe = positional_encoding(E, max_len=1200)
    prep = prepare_params(params, pe)

    d_feat = cal_dihedrals(x_pos)                                 # (B, L, 6)

    out = node_mask_encoder_pallas(x_aa, d_feat, node_mask, seq_mask, prep)
    out = jax.block_until_ready(out)

    ref = reference(x_aa, d_feat, node_mask, seq_mask, params, pe)
    assert out.shape == (B, L, E)
    assert jnp.allclose(out, ref, atol=1e-5, rtol=1e-5), "mismatch vs JAX reference"

    print("KERNEL_OK")
</pallas_src>

<mosaic_0001>
module attributes {stable_mosaic.version = 11 : i64} {
  func.func @node_mask_encoder_kernel(%arg0: i32, %arg1: i32, %arg2: memref<1x8x20xf32, #tpu.memory_space<vmem>>, %arg3: memref<1x8x6xf32, #tpu.memory_space<vmem>>, %arg4: memref<1x8x1xi32, #tpu.memory_space<vmem>>, %arg5: memref<20x128xf32, #tpu.memory_space<vmem>>, %arg6: memref<1x128xf32, #tpu.memory_space<vmem>>, %arg7: memref<6x128xf32, #tpu.memory_space<vmem>>, %arg8: memref<1x128xf32, #tpu.memory_space<vmem>>, %arg9: memref<1x128xf32, #tpu.memory_space<vmem>>, %arg10: memref<1x8x128xf32, #tpu.memory_space<vmem>>, %arg11: memref<1x8x128xf32, #tpu.memory_space<vmem>>) attributes {dimension_semantics = [#tpu.dimension_semantics<parallel>, #tpu.dimension_semantics<parallel>], iteration_bounds = array<i64: 1, 2>, scalar_prefetch = 0 : i64, scratch_operands = 0 : i64, tpu.core_type = #tpu.core_type<tc>, window_params = [{transform_indices = @transform_0, window_bounds = array<i64: 1, 8, 20>}, {transform_indices = @transform_1, window_bounds = array<i64: 1, 8, 6>}, {transform_indices = @transform_2, window_bounds = array<i64: 1, 8, 1>}, {pipeline_mode = #tpu.pipeline_mode<synchronous>, transform_indices = @transform_3, window_bounds = array<i64: 20, 128>}, {pipeline_mode = #tpu.pipeline_mode<synchronous>, transform_indices = @transform_4, window_bounds = array<i64: 1, 128>}, {pipeline_mode = #tpu.pipeline_mode<synchronous>, transform_indices = @transform_5, window_bounds = array<i64: 6, 128>}, {pipeline_mode = #tpu.pipeline_mode<synchronous>, transform_indices = @transform_6, window_bounds = array<i64: 1, 128>}, {pipeline_mode = #tpu.pipeline_mode<synchronous>, transform_indices = @transform_7, window_bounds = array<i64: 1, 128>}, {transform_indices = @transform_8, window_bounds = array<i64: 1, 8, 128>}, {transform_indices = @transform_9, window_bounds = array<i64: 1, 8, 128>}]} {
    %c0 = arith.constant 0 : index
    %c0_0 = arith.constant 0 : index
    %c0_1 = arith.constant 0 : index
    %0 = vector.load %arg2[%c0, %c0_0, %c0_1] : memref<1x8x20xf32, #tpu.memory_space<vmem>>, vector<1x8x20xf32>
    %1 = vector.shape_cast %0 : vector<1x8x20xf32> to vector<8x20xf32>
    %c0_2 = arith.constant 0 : index
    %c0_3 = arith.constant 0 : index
    %c0_4 = arith.constant 0 : index
    %2 = vector.load %arg3[%c0_2, %c0_3, %c0_4] : memref<1x8x6xf32, #tpu.memory_space<vmem>>, vector<1x8x6xf32>
    %3 = vector.shape_cast %2 : vector<1x8x6xf32> to vector<8x6xf32>
    %c0_5 = arith.constant 0 : index
    %c0_6 = arith.constant 0 : index
    %c0_7 = arith.constant 0 : index
    %4 = vector.load %arg4[%c0_5, %c0_6, %c0_7] : memref<1x8x1xi32, #tpu.memory_space<vmem>>, vector<1x8x1xi32>
    %5 = vector.shape_cast %4 : vector<1x8x1xi32> to vector<8x1xi32>
    %c0_8 = arith.constant 0 : index
    %c0_9 = arith.constant 0 : index
    %6 = vector.load %arg5[%c0_8, %c0_9] : memref<20x128xf32, #tpu.memory_space<vmem>>, vector<20x128xf32>
    %cst = arith.constant dense<0.000000e+00> : vector<8x128xf32>
    %7 = tpu.matmul %1, %6, %cst {dimension_numbers = #tpu.dot_dimension_numbers<[1], [0], [0], [1], [0, 0, 1, 1], [], []>} : vector<8x20xf32>, vector<20x128xf32>, vector<8x128xf32> -> vector<8x128xf32>
    %c0_10 = arith.constant 0 : index
    %c0_11 = arith.constant 0 : index
    %8 = vector.load %arg6[%c0_10, %c0_11] : memref<1x128xf32, #tpu.memory_space<vmem>>, vector<1x128xf32>
    %9 = vector.broadcast %8 : vector<1x128xf32> to vector<8x128xf32>
    %10 = arith.addf %7, %9 : vector<8x128xf32>
    %c1_i32 = arith.constant 1 : i32
    %11 = vector.broadcast %c1_i32 : i32 to vector<8x1xi32>
    %12 = arith.cmpi eq, %5, %11 : vector<8x1xi32>
    %c0_12 = arith.constant 0 : index
    %c0_13 = arith.constant 0 : index
    %13 = vector.load %arg8[%c0_12, %c0_13] : memref<1x128xf32, #tpu.memory_space<vmem>>, vector<1x128xf32>
    %14 = vector.shape_cast %12 : vector<8x1xi1> to vector<8x1xi1>
    %15 = vector.broadcast %14 : vector<8x1xi1> to vector<8x128xi1>
    %16 = vector.shape_cast %13 : vector<1x128xf32> to vector<1x128xf32>
    %17 = vector.broadcast %16 : vector<1x128xf32> to vector<8x128xf32>
    %18 = arith.select %15, %17, %10 : vector<8x128xi1>, vector<8x128xf32>
    %c2_i32 = arith.constant 2 : i32
    %19 = vector.broadcast %c2_i32 : i32 to vector<8x1xi32>
    %20 = arith.cmpi eq, %5, %19 : vector<8x1xi32>
    %c0_14 = arith.constant 0 : index
    %c0_15 = arith.constant 0 : index
    %21 = vector.load %arg9[%c0_14, %c0_15] : memref<1x128xf32, #tpu.memory_space<vmem>>, vector<1x128xf32>
    %22 = vector.shape_cast %20 : vector<8x1xi1> to vector<8x1xi1>
    %23 = vector.broadcast %22 : vector<8x1xi1> to vector<8x128xi1>
    %24 = vector.shape_cast %21 : vector<1x128xf32> to vector<1x128xf32>
    %25 = vector.broadcast %24 : vector<1x128xf32> to vector<8x128xf32>
    %26 = arith.select %23, %25, %18 : vector<8x128xi1>, vector<8x128xf32>
    %c0_16 = arith.constant 0 : index
    %c0_17 = arith.constant 0 : index
    %27 = vector.load %arg7[%c0_16, %c0_17] : memref<6x128xf32, #tpu.memory_space<vmem>>, vector<6x128xf32>
    %cst_18 = arith.constant dense<0.000000e+00> : vector<8x128xf32>
    %28 = tpu.matmul %3, %27, %cst_18 {dimension_numbers = #tpu.dot_dimension_numbers<[1], [0], [0], [1], [0, 0, 1, 1], [], []>} : vector<8x6xf32>, vector<6x128xf32>, vector<8x128xf32> -> vector<8x128xf32>
    %29 = arith.addf %26, %28 : vector<8x128xf32>
    %c0_19 = arith.constant 0 : index
    %c0_20 = arith.constant 0 : index
    %c0_21 = arith.constant 0 : index
    %30 = vector.load %arg10[%c0_19, %c0_20, %c0_21] : memref<1x8x128xf32, #tpu.memory_space<vmem>>, vector<1x8x128xf32>
    %31 = vector.shape_cast %30 : vector<1x8x128xf32> to vector<8x128xf32>
    %32 = arith.addf %29, %31 : vector<8x128xf32>
    %c0_22 = arith.constant 0 : index
    %c0_23 = arith.constant 0 : index
    %c0_24 = arith.constant 0 : index
    %33 = vector.load %arg11[%c0_22, %c0_23, %c0_24] : memref<1x8x128xf32, #tpu.memory_space<vmem>>, vector<1x8x128xf32>
    %34 = vector.shape_cast %33 : vector<1x8x128xf32> to vector<8x128xf32>
    %35 = vector.shape_cast %32 : vector<8x128xf32> to vector<1x8x128xf32>
    tpu.vector_store %arg11[%c0_22, %c0_23, %c0_24], %35 {strides = array<i32>} : memref<1x8x128xf32, #tpu.memory_space<vmem>>, vector<1x8x128xf32>,
    return
  }
  func.func @transform_0(%arg0: i32, %arg1: i32) -> (i32, i32, i32) {
    %c0_i32 = arith.constant 0 : i32
    %c0_i32_0 = arith.constant 0 : i32
    return %arg1, %arg0, %c0_i32 : i32, i32, i32
  }
  func.func @transform_1(%arg0: i32, %arg1: i32) -> (i32, i32, i32) {
    %c0_i32 = arith.constant 0 : i32
    %c0_i32_0 = arith.constant 0 : i32
    return %arg1, %arg0, %c0_i32 : i32, i32, i32
  }
  func.func @transform_2(%arg0: i32, %arg1: i32) -> (i32, i32, i32) {
    %c0_i32 = arith.constant 0 : i32
    %c0_i32_0 = arith.constant 0 : i32
    return %arg1, %arg0, %c0_i32 : i32, i32, i32
  }
  func.func @transform_3(%arg0: i32, %arg1: i32) -> (i32, i32) {
    %c0_i32 = arith.constant 0 : i32
    %c0_i32_0 = arith.constant 0 : i32
    %c0_i32_1 = arith.constant 0 : i32
    return %c0_i32, %c0_i32_0 : i32, i32
  }
  func.func @transform_4(%arg0: i32, %arg1: i32) -> (i32, i32) {
    %c0_i32 = arith.constant 0 : i32
    %c0_i32_0 = arith.constant 0 : i32
    %c0_i32_1 = arith.constant 0 : i32
    return %c0_i32, %c0_i32_0 : i32, i32
  }
  func.func @transform_5(%arg0: i32, %arg1: i32) -> (i32, i32) {
    %c0_i32 = arith.constant 0 : i32
    %c0_i32_0 = arith.constant 0 : i32
    %c0_i32_1 = arith.constant 0 : i32
    return %c0_i32, %c0_i32_0 : i32, i32
  }
  func.func @transform_6(%arg0: i32, %arg1: i32) -> (i32, i32) {
    %c0_i32 = arith.constant 0 : i32
    %c0_i32_0 = arith.constant 0 : i32
    %c0_i32_1 = arith.constant 0 : i32
    return %c0_i32, %c0_i32_0 : i32, i32
  }
  func.func @transform_7(%arg0: i32, %arg1: i32) -> (i32, i32) {
    %c0_i32 = arith.constant 0 : i32
    %c0_i32_0 = arith.constant 0 : i32
    %c0_i32_1 = arith.constant 0 : i32
    return %c0_i32, %c0_i32_0 : i32, i32
  }
  func.func @transform_8(%arg0: i32, %arg1: i32) -> (i32, i32, i32) {
    %c0_i32 = arith.constant 0 : i32
    %c0_i32_0 = arith.constant 0 : i32
    %c0_i32_1 = arith.constant 0 : i32
    return %c0_i32, %arg0, %c0_i32_0 : i32, i32, i32
  }
  func.func @transform_9(%arg0: i32, %arg1: i32) -> (i32, i32, i32) {
    %c0_i32 = arith.constant 0 : i32
    %c0_i32_0 = arith.constant 0 : i32
    return %arg1, %arg0, %c0_i32 : i32, i32, i32
  }
}

</mosaic_0001>

<llo_original>
// kernel: tpu_custom_call.1
$region0: #{tpu_custom_call.1}
  #allocation0 [shape = 'u32[]', space=smem, size = 0x4, offset = 0x4, fixed_abs, tag = 'smem constant byte address 0x4 - core index']
  #allocation1 [shape = 'u32[144,128]{1,0:T(1,128)}', space=vmem, size = 0x12000, scoped, tag = 'internal scratch']
  %s0 = inlined_call_operand.vmem [shape: f32[2,8,20], index: 0, kind: input, shape index: {}]
  %s1 = inlined_call_operand.vmem [shape: f32[2,8,6], index: 1, kind: input, shape index: {}]
  %s2 = inlined_call_operand.vmem [shape: s32[2,8,1], index: 2, kind: input, shape index: {}]
  %s3 = inlined_call_operand.vmem [shape: f32[20,128], index: 3, kind: input, shape index: {}]
  %s4 = inlined_call_operand.vmem [shape: f32[1,128], index: 4, kind: input, shape index: {}]
  %s5 = inlined_call_operand.vmem [shape: f32[6,128], index: 5, kind: input, shape index: {}]
  %s6 = inlined_call_operand.vmem [shape: f32[1,128], index: 6, kind: input, shape index: {}]
  %s7 = inlined_call_operand.vmem [shape: f32[1,128], index: 7, kind: input, shape index: {}]
  %s8 = inlined_call_operand.hbm [shape: f32[1,1200,128], index: 8, kind: input, shape index: {}]
  %s9 = inlined_call_operand.hbm [shape: f32[2,8,128], index: 9, kind: output, shape index: {}]
  %s10 = sld [smem:[#allocation0]]
  $region73: #{tpu_custom_call.1} parent=0
    _
  %s12 = ssub.s32 1, %s10
  %s13 = scalar_select 0, %s12, %s10
  $region1: #{tpu_custom_call.1} parent=0
    #allocation2 [shape = 'u8[4096]{0}', space=vmem, size = 0x1000, scoped, tag = 'input window, operand 8, single buffered']
    #allocation3 [shape = 's32[2]{0}', space=sflag, size = 0x8, scoped, tag = 'scoped memory for tpu_custom_call.1']
    #allocation4 [shape = 's32[2]{0}', space=sflag, size = 0x8, scoped, tag = 'scoped memory for tpu_custom_call.1']
    #allocation5 [shape = 'u8[8192]{0}', space=vmem, size = 0x2000, scoped, tag = 'output window, operand 0']
    %14 = vsyncpa [#allocation3], 0
    %15 = vsyncpa [#allocation4], 0
    %s16 = scalar_lea.sflag [#allocation4], 1
    %17 = vsyncpa %s16, 0
    loop: start=0, step=1, limit=4
    $region2: #{tpu_custom_call.1} parent=1 // loop_pre_header
      _
    $region3: #{tpu_custom_call.1} parent=1 // loop_header
      %s19 = sphi 0, %s23
      %p20 = scmp.ge.s32.totalorder %s19, 4
      %s26 = sphi 0, %s38
      %s27 = sphi 0, %s34
      %s28 = sphi 0, %s26
      %s29 = sphi 0, %s27
      %s30 = sphi 0, %s28
      %s31 = sphi 0, %s29
      %s43 = sphi 0, %s45
      %s46 = sphi 0, %s43
      %s47 = sphi 0, %s46
      %s63 = sphi 0, %s47
      %s71 = sphi 0, %s73
      %s74 = sphi 0, %s71
      %s75 = sphi 0, %s74
      %s91 = sphi 0, %s75
      %s99 = sphi 0, %s101
      %s102 = sphi 0, %s99
      %s103 = sphi 0, %s102
      %s119 = sphi 0, %s103
      %s123 = sphi 0, %s123
      %s125 = sphi 0, %s123
      %s126 = sphi 0, %s125
      %s140 = sphi 0, %s126
      %s144 = sphi 0, %s144
      %s146 = sphi 0, %s144
      %s147 = sphi 0, %s146
      %s161 = sphi 0, %s147
      %s165 = sphi 0, %s165
      %s167 = sphi 0, %s165
      %s168 = sphi 0, %s167
      %s182 = sphi 0, %s168
      %s186 = sphi 0, %s186
      %s188 = sphi 0, %s186
      %s189 = sphi 0, %s188
      %s203 = sphi 0, %s189
      %s207 = sphi 0, %s207
      %s209 = sphi 0, %s207
      %s210 = sphi 0, %s209
      %s224 = sphi 0, %s210
      %s230 = sphi 0, %s232
      %s233 = sphi 0, %s230
      %s234 = sphi 0, %s233
      %s250 = sphi 0, %s234
      %s258 = sphi 0, %s260
      %s261 = sphi 0, %s258
      %s262 = sphi 0, %s261
      %s278 = sphi 0, %s262
    $region4: #{tpu_custom_call.1} parent=1 // loop_header_branch
      %22 = sbr.rel (%p20) target = $region8
    $region5: #{tpu_custom_call.1} parent=1 // loop_body
      %s24 = ssub.s32 %s19, 1
      %s25 = ssub.s32 %s19, 2
      %s32 = sadd.s32 1, %s27
      %p33 = scmp.ge.s32.totalorder %s32, 2
      %s34 = scalar_select %p33, 0, %s32
      %s35 = sadd.s32 1, %s26
      %s36 = scalar_select %p33, %s35, %s26
      %p37 = scmp.ge.s32.totalorder %s36, 1
      %s38 = scalar_select %p37, 0, %s36
      %s39 = ssub.s32 %s27, %s34
      %s40 = ssub.s32 %s26, %s38
      %s41 = sor.u32 %s39, %s40
      %p42 = scmp.eq.s32.totalorder %s41, 0
      %s44 = sadd.s32 %s43, 1
      %s45 = scalar_select %p42, %s43, %s44
      %p48 = pneg %p42
      %p49 = scmp.eq.s32.totalorder %s19, 1
      %p50 = por %p48, %p49
      %p51 = scmp.ne.s32.totalorder %s43, %s46
      %p52 = scmp.eq.s32.totalorder %s19, 0
      %p53 = por %p51, %p52
      %p54 = scmp.ne.s32.totalorder %s43, %s46
      %p55 = scmp.eq.s32.totalorder %s24, 1
      %p56 = por %p54, %p55
      %p57 = scmp.ne.s32.totalorder %s46, %s47
      %p58 = scmp.eq.s32.totalorder %s24, 0
      %p59 = por %p57, %p58
      %p60 = scmp.ne.s32.totalorder %s46, %s47
      %p61 = scmp.eq.s32.totalorder %s25, 1
      %p62 = por %p60, %p61
      %p64 = scmp.ne.s32.totalorder %s47, %s63
      %p65 = scmp.eq.s32.totalorder %s25, 0
      %p66 = por %p64, %p65
      %s67 = ssub.s32 %s27, %s34
      %s68 = ssub.s32 %s26, %s38
      %s69 = sor.u32 %s67, %s68
      %p70 = scmp.eq.s32.totalorder %s69, 0
      %s72 = sadd.s32 %s71, 1
      %s73 = scalar_select %p70, %s71, %s72
      %p76 = pneg %p70
      %p77 = scmp.eq.s32.totalorder %s19, 1
      %p78 = por %p76, %p77
      %p79 = scmp.ne.s32.totalorder %s71, %s74
      %p80 = scmp.eq.s32.totalorder %s19, 0
      %p81 = por %p79, %p80
      %p82 = scmp.ne.s32.totalorder %s71, %s74
      %p83 = scmp.eq.s32.totalorder %s24, 1
      %p84 = por %p82, %p83
      %p85 = scmp.ne.s32.totalorder %s74, %s75
      %p86 = scmp.eq.s32.totalorder %s24, 0
      %p87 = por %p85, %p86
      %p88 = scmp.ne.s32.totalorder %s74, %s75
      %p89 = scmp.eq.s32.totalorder %s25, 1
      %p90 = por %p88, %p89
      %p92 = scmp.ne.s32.totalorder %s75, %s91
      %p93 = scmp.eq.s32.totalorder %s25, 0
      %p94 = por %p92, %p93
      %s95 = ssub.s32 %s27, %s34
      %s96 = ssub.s32 %s26, %s38
      %s97 = sor.u32 %s95, %s96
      %p98 = scmp.eq.s32.totalorder %s97, 0
      %s100 = sadd.s32 %s99, 1
      %s101 = scalar_select %p98, %s99, %s100
      %p104 = pneg %p98
      %p105 = scmp.eq.s32.totalorder %s19, 1
      %p106 = por %p104, %p105
      %p107 = scmp.ne.s32.totalorder %s99, %s102
      %p108 = scmp.eq.s32.totalorder %s19, 0
      %p109 = por %p107, %p108
      %p110 = scmp.ne.s32.totalorder %s99, %s102
      %p111 = scmp.eq.s32.totalorder %s24, 1
      %p112 = por %p110, %p111
      %p113 = scmp.ne.s32.totalorder %s102, %s103
      %p114 = scmp.eq.s32.totalorder %s24, 0
      %p115 = por %p113, %p114
      %p116 = scmp.ne.s32.totalorder %s102, %s103
      %p117 = scmp.eq.s32.totalorder %s25, 1
      %p118 = por %p116, %p117
      %p120 = scmp.ne.s32.totalorder %s103, %s119
      %p121 = scmp.eq.s32.totalorder %s25, 0
      %p122 = por %p120, %p121
      %s124 = sadd.s32 %s123, 1
      %p127 = scmp.eq.s32.totalorder %s19, 1
      %p128 = scmp.ne.s32.totalorder %s123, %s125
      %p129 = scmp.eq.s32.totalorder %s19, 0
      %p130 = por %p128, %p129
      %p131 = scmp.ne.s32.totalorder %s123, %s125
      %p132 = scmp.eq.s32.totalorder %s24, 1
      %p133 = por %p131, %p132
      %p134 = scmp.ne.s32.totalorder %s125, %s126
      %p135 = scmp.eq.s32.totalorder %s24, 0
      %p136 = por %p134, %p135
      %p137 = scmp.ne.s32.totalorder %s125, %s126
      %p138 = scmp.eq.s32.totalorder %s25, 1
      %p139 = por %p137, %p138
      %p141 = scmp.ne.s32.totalorder %s126, %s140
      %p142 = scmp.eq.s32.totalorder %s25, 0
      %p143 = por %p141, %p142
      %s145 = sadd.s32 %s144, 1
      %p148 = scmp.eq.s32.totalorder %s19, 1
      %p149 = scmp.ne.s32.totalorder %s144, %s146
      %p150 = scmp.eq.s32.totalorder %s19, 0
      %p151 = por %p149, %p150
      %p152 = scmp.ne.s32.totalorder %s144, %s146
      %p153 = scmp.eq.s32.totalorder %s24, 1
      %p154 = por %p152, %p153
      %p155 = scmp.ne.s32.totalorder %s146, %s147
      %p156 = scmp.eq.s32.totalorder %s24, 0
      %p157 = por %p155, %p156
      %p158 = scmp.ne.s32.totalorder %s146, %s147
      %p159 = scmp.eq.s32.totalorder %s25, 1
      %p160 = por %p158, %p159
      %p162 = scmp.ne.s32.totalorder %s147, %s161
      %p163 = scmp.eq.s32.totalorder %s25, 0
      %p164 = por %p162, %p163
      %s166 = sadd.s32 %s165, 1
      %p169 = scmp.eq.s32.totalorder %s19, 1
      %p170 = scmp.ne.s32.totalorder %s165, %s167
      %p171 = scmp.eq.s32.totalorder %s19, 0
      %p172 = por %p170, %p171
      %p173 = scmp.ne.s32.totalorder %s165, %s167
      %p174 = scmp.eq.s32.totalorder %s24, 1
      %p175 = por %p173, %p174
      %p176 = scmp.ne.s32.totalorder %s167, %s168
      %p177 = scmp.eq.s32.totalorder %s24, 0
      %p178 = por %p176, %p177
      %p179 = scmp.ne.s32.totalorder %s167, %s168
      %p180 = scmp.eq.s32.totalorder %s25, 1
      %p181 = por %p179, %p180
      %p183 = scmp.ne.s32.totalorder %s168, %s182
      %p184 = scmp.eq.s32.totalorder %s25, 0
      %p185 = por %p183, %p184
      %s187 = sadd.s32 %s186, 1
      %p190 = scmp.eq.s32.totalorder %s19, 1
      %p191 = scmp.ne.s32.totalorder %s186, %s188
      %p192 = scmp.eq.s32.totalorder %s19, 0
      %p193 = por %p191, %p192
      %p194 = scmp.ne.s32.totalorder %s186, %s188
      %p195 = scmp.eq.s32.totalorder %s24, 1
      %p196 = por %p194, %p195
      %p197 = scmp.ne.s32.totalorder %s188, %s189
      %p198 = scmp.eq.s32.totalorder %s24, 0
      %p199 = por %p197, %p198
      %p200 = scmp.ne.s32.totalorder %s188, %s189
      %p201 = scmp.eq.s32.totalorder %s25, 1
      %p202 = por %p200, %p201
      %p204 = scmp.ne.s32.totalorder %s189, %s203
      %p205 = scmp.eq.s32.totalorder %s25, 0
      %p206 = por %p204, %p205
      %s208 = sadd.s32 %s207, 1
      %p211 = scmp.eq.s32.totalorder %s19, 1
      %p212 = scmp.ne.s32.totalorder %s207, %s209
      %p213 = scmp.eq.s32.totalorder %s19, 0
      %p214 = por %p212, %p213
      %p215 = scmp.ne.s32.totalorder %s207, %s209
      %p216 = scmp.eq.s32.totalorder %s24, 1
      %p217 = por %p215, %p216
      %p218 = scmp.ne.s32.totalorder %s209, %s210
      %p219 = scmp.eq.s32.totalorder %s24, 0
      %p220 = por %p218, %p219
      %p221 = scmp.ne.s32.totalorder %s209, %s210
      %p222 = scmp.eq.s32.totalorder %s25, 1
      %p223 = por %p221, %p222
      %p225 = scmp.ne.s32.totalorder %s210, %s224
      %p226 = scmp.eq.s32.totalorder %s25, 0
      %p227 = por %p225, %p226
      %s228 = ssub.s32 %s26, %s38
      %p229 = scmp.eq.s32.totalorder %s228, 0
      %s231 = sadd.s32 %s230, 1
      %s232 = scalar_select %p229, %s230, %s231
      %p235 = pneg %p229
      %p236 = scmp.eq.s32.totalorder %s19, 1
      %p237 = por %p235, %p236
      %p238 = scmp.ne.s32.totalorder %s230, %s233
      %p239 = scmp.eq.s32.totalorder %s19, 0
      %p240 = por %p238, %p239
      %p241 = scmp.ne.s32.totalorder %s230, %s233
      %p242 = scmp.eq.s32.totalorder %s24, 1
      %p243 = por %p241, %p242
      %p244 = scmp.ne.s32.totalorder %s233, %s234
      %p245 = scmp.eq.s32.totalorder %s24, 0
      %p246 = por %p244, %p245
      %p247 = scmp.ne.s32.totalorder %s233, %s234
      %p248 = scmp.eq.s32.totalorder %s25, 1
      %p249 = por %p247, %p248
      %p251 = scmp.ne.s32.totalorder %s234, %s250
      %p252 = scmp.eq.s32.totalorder %s25, 0
      %p253 = por %p251, %p252
      %s254 = ssub.s32 %s27, %s34
      %s255 = ssub.s32 %s26, %s38
      %s256 = sor.u32 %s254, %s255
      %p257 = scmp.eq.s32.totalorder %s256, 0
      %s259 = sadd.s32 %s258, 1
      %s260 = scalar_select %p257, %s258, %s259
      %p263 = pneg %p257
      %p264 = scmp.eq.s32.totalorder %s19, 1
      %p265 = por %p263, %p264
      %p266 = scmp.ne.s32.totalorder %s258, %s261
      %p267 = scmp.eq.s32.totalorder %s19, 0
      %p268 = por %p266, %p267
      %p269 = scmp.ne.s32.totalorder %s258, %s261
      %p270 = scmp.eq.s32.totalorder %s24, 1
      %p271 = por %p269, %p270
      %p272 = scmp.ne.s32.totalorder %s261, %s262
      %p273 = scmp.eq.s32.totalorder %s24, 0
      %p274 = por %p272, %p273
      %p275 = scmp.ne.s32.totalorder %s261, %s262
      %p276 = scmp.eq.s32.totalorder %s25, 1
      %p277 = por %p275, %p276
      %p279 = scmp.ne.s32.totalorder %s262, %s278
      %p280 = scmp.eq.s32.totalorder %s25, 0
      %p281 = por %p279, %p280
      %p282 = scmp.le.s32.totalorder 1, %s19
      %p283 = scmp.lt.s32.totalorder %s19, 3
      %p284 = pnand %p282, %p283
      %p285 = pneg %p284
      // Predicated region
      $region9: #{tpu_custom_call.1} parent=5 // pred_check
        _
      $region10: #{tpu_custom_call.1} parent=5 // pred_check_branch
        %287 = sbr.rel (%p284) target = $region12
      $region11: #{tpu_custom_call.1} parent=5 // pred_region
        %s288 = ssub.s32 %s19, 1
        // Predicated region
        $region13: #{tpu_custom_call.1} parent=11 // pred_check
          %p289 = pneg %p136
        $region14: #{tpu_custom_call.1} parent=11 // pred_check_branch
          %291 = sbr.rel (%p289) target = $region16
        $region15: #{tpu_custom_call.1} parent=11 // pred_region
          _
        $region16: #{tpu_custom_call.1} parent=11 // pred_fallthru
          _
        // Predicated region
        $region17: #{tpu_custom_call.1} parent=11 // pred_check
          %p292 = pneg %p157
        $region18: #{tpu_custom_call.1} parent=11 // pred_check_branch
          %294 = sbr.rel (%p292) target = $region20
        $region19: #{tpu_custom_call.1} parent=11 // pred_region
          _
        $region20: #{tpu_custom_call.1} parent=11 // pred_fallthru
          _
        // Predicated region
        $region21: #{tpu_custom_call.1} parent=11 // pred_check
          %p295 = pneg %p178
        $region22: #{tpu_custom_call.1} parent=11 // pred_check_branch
          %297 = sbr.rel (%p295) target = $region24
        $region23: #{tpu_custom_call.1} parent=11 // pred_region
          _
        $region24: #{tpu_custom_call.1} parent=11 // pred_fallthru
          _
        // Predicated region
        $region25: #{tpu_custom_call.1} parent=11 // pred_check
          %p298 = pneg %p199
        $region26: #{tpu_custom_call.1} parent=11 // pred_check_branch
          %300 = sbr.rel (%p298) target = $region28
        $region27: #{tpu_custom_call.1} parent=11 // pred_region
          _
        $region28: #{tpu_custom_call.1} parent=11 // pred_fallthru
          _
        // Predicated region
        $region29: #{tpu_custom_call.1} parent=11 // pred_check
          %p301 = pneg %p220
        $region30: #{tpu_custom_call.1} parent=11 // pred_check_branch
          %303 = sbr.rel (%p301) target = $region32
        $region31: #{tpu_custom_call.1} parent=11 // pred_region
          _
        $region32: #{tpu_custom_call.1} parent=11 // pred_fallthru
          _
        // Predicated region
        $region33: #{tpu_custom_call.1} parent=11 // pred_check
          %p304 = pneg %p246
        $region34: #{tpu_custom_call.1} parent=11 // pred_check_branch
          %306 = sbr.rel (%p304) target = $region36
        $region35: #{tpu_custom_call.1} parent=11 // pred_region
          %s308 = ssub.s32 128, 128
          %309 = vsyncadd [#allocation3], %s308
          %s310 = smul.addr %s28, 128
          %s311 = scalar_lea.hbm %s8, %s310
          %s313 = sshll.u32 [#allocation2], 4
          %s314 = int_to_ptr.vmem [resolvable:$true] %s313
          %316 = dma.hbm_to_vmem [thread:$0]  %s311, 128, %s314, [#allocation3]
        $region36: #{tpu_custom_call.1} parent=11 // pred_fallthru
          _
      $region12: #{tpu_custom_call.1} parent=5 // pred_fallthru
        _
      %p317 = scmp.lt.s32.totalorder %s19, 2
      // Predicated region
      $region37: #{tpu_custom_call.1} parent=5 // pred_check
        %p318 = pneg %p317
      $region38: #{tpu_custom_call.1} parent=5 // pred_check_branch
        %320 = sbr.rel (%p318) target = $region40
      $region39: #{tpu_custom_call.1} parent=5 // pred_region
        // Predicated region
        $region41: #{tpu_custom_call.1} parent=39 // pred_check
          %p321 = pneg %p53
        $region42: #{tpu_custom_call.1} parent=39 // pred_check_branch
          %323 = sbr.rel (%p321) target = $region44
        $region43: #{tpu_custom_call.1} parent=39 // pred_region
          %p324 = scmp.lt.s32.totalorder %s27, 1
          %s325 = scalar_select %p324, %s27, 1
          %p326 = scmp.lt.s32.totalorder %s26, 0
          %s327 = scalar_select %p326, %s26, 0
          %s328 = sadd.s32 %s327, %s325
          %s329 = smul.addr %s328, 8
          %s330 = scalar_lea.vmem %s0, %s329
        $region44: #{tpu_custom_call.1} parent=39 // pred_fallthru
          _
        // Predicated region
        $region45: #{tpu_custom_call.1} parent=39 // pred_check
          %p331 = pneg %p81
        $region46: #{tpu_custom_call.1} parent=39 // pred_check_branch
          %333 = sbr.rel (%p331) target = $region48
        $region47: #{tpu_custom_call.1} parent=39 // pred_region
          %p334 = scmp.lt.s32.totalorder %s27, 1
          %s335 = scalar_select %p334, %s27, 1
          %p336 = scmp.lt.s32.totalorder %s26, 0
          %s337 = scalar_select %p336, %s26, 0
          %s338 = sadd.s32 %s337, %s335
          %s339 = smul.addr %s338, 8
          %s340 = scalar_lea.vmem %s1, %s339
        $region48: #{tpu_custom_call.1} parent=39 // pred_fallthru
          _
        // Predicated region
        $region49: #{tpu_custom_call.1} parent=39 // pred_check
          %p341 = pneg %p109
        $region50: #{tpu_custom_call.1} parent=39 // pred_check_branch
          %343 = sbr.rel (%p341) target = $region52
        $region51: #{tpu_custom_call.1} parent=39 // pred_region
          %p344 = scmp.lt.s32.totalorder %s27, 1
          %s345 = scalar_select %p344, %s27, 1
          %p346 = scmp.lt.s32.totalorder %s26, 0
          %s347 = scalar_select %p346, %s26, 0
          %s348 = sadd.s32 %s347, %s345
          %s349 = smul.addr %s348, 8
          %s350 = scalar_lea.vmem %s2, %s349
        $region52: #{tpu_custom_call.1} parent=39 // pred_fallthru
          _
      $region40: #{tpu_custom_call.1} parent=5 // pred_fallthru
        _
      %p351 = scmp.le.s32.totalorder 1, %s19
      %p352 = scmp.lt.s32.totalorder %s19, 3
      %p353 = pnand %p351, %p352
      %p354 = pneg %p353
      // Predicated region
      $region53: #{tpu_custom_call.1} parent=5 // pred_check
        _
      $region54: #{tpu_custom_call.1} parent=5 // pred_check_branch
        %356 = sbr.rel (%p353) target = $region56
      $region55: #{tpu_custom_call.1} parent=5 // pred_region
        %s357 = ssub.s32 %s19, 1
        // Predicated region
        $region57: #{tpu_custom_call.1} parent=55 // pred_check
          %p358 = pneg %p246
        $region58: #{tpu_custom_call.1} parent=55 // pred_check_branch
          %360 = sbr.rel (%p358) target = $region60
        $region59: #{tpu_custom_call.1} parent=55 // pred_region
          %361 = dma.done [#allocation3], 128
        $region60: #{tpu_custom_call.1} parent=55 // pred_fallthru
          _
        %p362 = scmp.lt.s32.totalorder %s29, 1
        %s363 = scalar_select %p362, %s29, 1
        %p364 = scmp.lt.s32.totalorder %s28, 0
        %s365 = scalar_select %p364, %s28, 0
        %s366 = sadd.s32 %s365, %s363
        %s367 = smul.addr %s366, 8
        %s368 = scalar_lea.vmem %s0, %s367
        %p369 = pneg %p59
        %p370 = pneg %p56
        %p371 = scmp.lt.s32.totalorder %s29, 1
        %s372 = scalar_select %p371, %s29, 1
        %p373 = scmp.lt.s32.totalorder %s28, 0
        %s374 = scalar_select %p373, %s28, 0
        %s375 = sadd.s32 %s374, %s372
        %s376 = smul.addr %s375, 8
        %s377 = scalar_lea.vmem %s1, %s376
        %p378 = pneg %p87
        %p379 = pneg %p84
        %p380 = scmp.lt.s32.totalorder %s29, 1
        %s381 = scalar_select %p380, %s29, 1
        %p382 = scmp.lt.s32.totalorder %s28, 0
        %s383 = scalar_select %p382, %s28, 0
        %s384 = sadd.s32 %s383, %s381
        %s385 = smul.addr %s384, 8
        %s386 = scalar_lea.vmem %s2, %s385
        %p387 = pneg %p115
        %p388 = pneg %p112
        %p389 = pneg %p136
        %p390 = pneg %p133
        %p391 = pneg %p157
        %p392 = pneg %p154
        %p393 = pneg %p178
        %p394 = pneg %p175
        %p395 = pneg %p199
        %p396 = pneg %p196
        %p397 = pneg %p220
        %p398 = pneg %p217
        %p399 = pneg %p246
        %p400 = pneg %p243
        %p401 = pneg %p274
        %p402 = pneg %p271
        %s403 = sand.u32 %s261, 1
        %s404 = scalar_lea.sflag [#allocation4], %s403
        %s405 = sand.u32 %s261, 1
        %s406 = smul.addr %s405, 8
        %s407 = scalar_lea.vmem [#allocation5], %s406
        %p408 = scmp.lt.s32.totalorder %s29, 1
        %s409 = scalar_select %p408, %s29, 1
        %p410 = scmp.lt.s32.totalorder %s28, 0
        %s411 = scalar_select %p410, %s28, 0
        %s412 = sadd.s32 %s411, %s409
        %s413 = smul.addr %s412, 8
        %s414 = scalar_lea.vmem %s0, %s413
        %p415 = scmp.lt.s32.totalorder %s29, 1
        %s416 = scalar_select %p415, %s29, 1
        %p417 = scmp.lt.s32.totalorder %s28, 0
        %s418 = scalar_select %p417, %s28, 0
        %s419 = sadd.s32 %s418, %s416
        %s420 = smul.addr %s419, 8
        %s421 = scalar_lea.vmem %s1, %s420
        %p422 = scmp.lt.s32.totalorder %s29, 1
        %s423 = scalar_select %p422, %s29, 1
        %p424 = scmp.lt.s32.totalorder %s28, 0
        %s425 = scalar_select %p424, %s28, 0
        %s426 = sadd.s32 %s425, %s423
        %s427 = smul.addr %s426, 8
        %s428 = scalar_lea.vmem %s2, %s427
        %v429 = vld [vmem:[%s414] sm:$0xff]
        %v430 = vld [vmem:[%s421] sm:$0xff]
        %v431 = vld [vmem:[%s428] sm:$0xff]
        %v432 = vld [vmem:[%s3] sm:$0xff]
        %v433 = vld [vmem:[%s3 + $0x8] sm:$0xff]
        %v434 = vld [vmem:[%s3 + $0x10] sm:$0xf]
        %v435 = vld [vmem:[%s4] sm:$0x1]
        %v437 = vlaneseq
        %v438 = vshrl.u32 %v437, 7
        %v439 = vsub.s32 0, %v438
        %v440 = vrot.slane %v435, %v439
        %vm442 = vcmask 162816
        %v444 = vsel %vm442, %v429, 0
        %vm446 = vcmask 1043456
        %v448 = vsel %vm446, %v434, 0
        %450 = vmatprep.subr.mxu0 0.0
        %451 = vmatpush1.msra.mxu0 %v432
        %452 = vmatprep.subr.mxu0 0.0
        %453 = vmatpush1.msra.mxu0 %v433
        %454 = vmatprep.subr.mxu0 0.0
        %455 = vmatpush1.msra.mxu0 %v448
        %456 = vmatprep.subr.mxu0 0.0
        %457 = vmatpush1.msra.mxu0 0.0
        %458 = vmatprep.subr.mxu0 0.0
        %459 = vmatpush1.msra.mxu0 0.0
        %460 = vmatprep.subr.mxu0 0.0
        %461 = vmatpush1.msra.mxu0 0.0
        %462 = vmatprep.subr.mxu0 0.0
        %463 = vmatpush1.msra.mxu0 0.0
        %464 = vmatprep.subr.mxu0 0.0
        %465 = vmatpush1.msra.mxu0 0.0
        %466 = vmatprep.subr.mxu0 0.0
        %467 = vmatpush1.msra.mxu0 0.0
        %468 = vmatprep.subr.mxu0 0.0
        %469 = vmatpush1.msra.mxu0 0.0
        %470 = vmatprep.subr.mxu0 0.0
        %471 = vmatpush1.msra.mxu0 0.0
        %472 = vmatprep.subr.mxu0 0.0
        %473 = vmatpush1.msra.mxu0 0.0
        %474 = vmatprep.subr.mxu0 0.0
        %475 = vmatpush1.msra.mxu0 0.0
        %476 = vmatprep.subr.mxu0 0.0
        %477 = vmatpush1.msra.mxu0 0.0
        %478 = vmatprep.subr.mxu0 0.0
        %479 = vmatpush1.msra.mxu0 0.0
        %480 = vmatprep.subr.mxu0 0.0
        %481 = vmatpush1.msra.mxu0 0.0
        %482 = vmatprep.subr.mxu0 0.0
        %483 = vmatpush1.msra.mxu0 0.0
        %484 = vmatprep.subr.mxu0 0.0
        %485 = vmatpush1.msra.mxu0 0.0
        %486 = vmatprep.subr.mxu0 0.0
        %487 = vmatpush1.msra.mxu0 0.0
        %488 = vmatprep.subr.mxu0 0.0
        %489 = vmatpush1.msra.mxu0 0.0
        %490 = vmatprep.subr.mxu0 0.0
        %491 = vmatpush1.msra.mxu0 0.0
        %492 = vmatprep.subr.mxu0 0.0
        %493 = vmatpush1.msra.mxu0 0.0
        %494 = vmatprep.subr.mxu0 0.0
        %495 = vmatpush1.msra.mxu0 0.0
        %496 = vmatprep.subr.mxu0 0.0
        %497 = vmatpush1.msra.mxu0 0.0
        %498 = vmatprep.subr.mxu0 0.0
        %499 = vmatpush1.msra.mxu0 0.0
        %500 = vmatprep.subr.mxu0 0.0
        %501 = vmatpush1.msra.mxu0 0.0
        %502 = vmatprep.subr.mxu0 0.0
        %503 = vmatpush1.msra.mxu0 0.0
        %504 = vmatprep.subr.mxu0 0.0
        %505 = vmatpush1.msra.mxu0 0.0
        %506 = vmatprep.subr.mxu0 0.0
        %507 = vmatpush1.msra.mxu0 0.0
        %508 = vmatprep.subr.mxu0 0.0
        %509 = vmatpush1.msra.mxu0 0.0
        %510 = vmatprep.subr.mxu0 0.0
        %511 = vmatpush1.msra.mxu0 0.0
        %512 = vmatprep.subr.mxu0 0.0
        %513 = vmatpush1.msra.mxu0 0.0
        %514 = vmatprep.mubr.f32.mxu0 0.0
        %515 = vmatmul.mubr.f32.gmra.mrb[0].mxu0 %v444
        %v516 = vpop.f32.mrb[0].mxu0
        %v517 = vadd.f32 %v440, %v516
        %v518 = vpop.f32.mrb[0].mxu0
        %519 = vdwg.mxu0
        %vm520 = vcmp.eq.s32.totalorder %v431, 1
        %v521 = vld [vmem:[%s6] sm:$0x1]
        %v522 = vsel %vm520, 1, 0
        %523 = vset.pattern.permute.xlu0 0
        %524 = vperm.xlu0 %523, %v522
        %v525 = vpop.permute.xlu0 %524
        %vm526 = vcmp.eq.s32.totalorder %v525, 1
        %v528 = vlaneseq
        %v529 = vshrl.u32 %v528, 7
        %v530 = vsub.s32 0, %v529
        %v531 = vrot.slane %v521, %v530
        %v533 = vsel %vm526, %v531, %v517
        %vm534 = vcmp.eq.s32.totalorder %v431, 2
        %v535 = vld [vmem:[%s7] sm:$0x1]
        %v536 = vsel %vm534, 1, 0
        %537 = vset.pattern.permute.xlu0 0
        %538 = vperm.xlu0 %537, %v536
        %v539 = vpop.permute.xlu0 %538
        %vm540 = vcmp.eq.s32.totalorder %v539, 1
        %v542 = vlaneseq
        %v543 = vshrl.u32 %v542, 7
        %v544 = vsub.s32 0, %v543
        %v545 = vrot.slane %v535, %v544
        %v547 = vsel %vm540, %v545, %v533
        %v548 = vld [vmem:[%s5] sm:$0x3f]
        %vm549 = vcmask 48128
        %v551 = vsel %vm549, %v430, 0
        %vm553 = vcmask 1045504
        %v555 = vsel %vm553, %v548, 0
        %557 = vmatprep.subr.mxu0 0.0
        %558 = vmatpush1.msra.mxu0 %v555
        %559 = vmatprep.subr.mxu0 0.0
        %560 = vmatpush1.msra.mxu0 0.0
        %561 = vmatprep.subr.mxu0 0.0
        %562 = vmatpush1.msra.mxu0 0.0
        %563 = vmatprep.subr.mxu0 0.0
        %564 = vmatpush1.msra.mxu0 0.0
        %565 = vmatprep.subr.mxu0 0.0
        %566 = vmatpush1.msra.mxu0 0.0
        %567 = vmatprep.subr.mxu0 0.0
        %568 = vmatpush1.msra.mxu0 0.0
        %569 = vmatprep.subr.mxu0 0.0
        %570 = vmatpush1.msra.mxu0 0.0
        %571 = vmatprep.subr.mxu0 0.0
        %572 = vmatpush1.msra.mxu0 0.0
        %573 = vmatprep.subr.mxu0 0.0
        %574 = vmatpush1.msra.mxu0 0.0
        %575 = vmatprep.subr.mxu0 0.0
        %576 = vmatpush1.msra.mxu0 0.0
        %577 = vmatprep.subr.mxu0 0.0
        %578 = vmatpush1.msra.mxu0 0.0
        %579 = vmatprep.subr.mxu0 0.0
        %580 = vmatpush1.msra.mxu0 0.0
        %581 = vmatprep.subr.mxu0 0.0
        %582 = vmatpush1.msra.mxu0 0.0
        %583 = vmatprep.subr.mxu0 0.0
        %584 = vmatpush1.msra.mxu0 0.0
        %585 = vmatprep.subr.mxu0 0.0
        %586 = vmatpush1.msra.mxu0 0.0
        %587 = vmatprep.subr.mxu0 0.0
        %588 = vmatpush1.msra.mxu0 0.0
        %589 = vmatprep.subr.mxu0 0.0
        %590 = vmatpush1.msra.mxu0 0.0
        %591 = vmatprep.subr.mxu0 0.0
        %592 = vmatpush1.msra.mxu0 0.0
        %593 = vmatprep.subr.mxu0 0.0
        %594 = vmatpush1.msra.mxu0 0.0
        %595 = vmatprep.subr.mxu0 0.0
        %596 = vmatpush1.msra.mxu0 0.0
        %597 = vmatprep.subr.mxu0 0.0
        %598 = vmatpush1.msra.mxu0 0.0
        %599 = vmatprep.subr.mxu0 0.0
        %600 = vmatpush1.msra.mxu0 0.0
        %601 = vmatprep.subr.mxu0 0.0
        %602 = vmatpush1.msra.mxu0 0.0
        %603 = vmatprep.subr.mxu0 0.0
        %604 = vmatpush1.msra.mxu0 0.0
        %605 = vmatprep.subr.mxu0 0.0
        %606 = vmatpush1.msra.mxu0 0.0
        %607 = vmatprep.subr.mxu0 0.0
        %608 = vmatpush1.msra.mxu0 0.0
        %609 = vmatprep.subr.mxu0 0.0
        %610 = vmatpush1.msra.mxu0 0.0
        %611 = vmatprep.subr.mxu0 0.0
        %612 = vmatpush1.msra.mxu0 0.0
        %613 = vmatprep.subr.mxu0 0.0
        %614 = vmatpush1.msra.mxu0 0.0
        %615 = vmatprep.subr.mxu0 0.0
        %616 = vmatpush1.msra.mxu0 0.0
        %617 = vmatprep.subr.mxu0 0.0
        %618 = vmatpush1.msra.mxu0 0.0
        %619 = vmatprep.subr.mxu0 0.0
        %620 = vmatpush1.msra.mxu0 0.0
        %621 = vmatprep.mubr.f32.mxu0 0.0
        %622 = vmatmul.mubr.f32.gmra.mrb[0].mxu0 %v551
        %v623 = vpop.f32.mrb[0].mxu0
        %v624 = vadd.f32 0.0, %v623
        %v625 = vpop.f32.mrb[0].mxu0
        %626 = vdwg.mxu0
        %v627 = vadd.f32 %v547, %v624
        %v628 = vld [vmem:[#allocation2] sm:$0xff]
        %v629 = vadd.f32 %v627, %v628
        %630 = vst [vmem:[%s407] sm:$0xff] %v629
        %s631 = sand.u32 %s261, 1
        %s632 = scalar_lea.sflag [#allocation4], %s631
        %s633 = sand.u32 %s261, 1
        %s634 = smul.addr %s633, 8
        %s635 = scalar_lea.vmem [#allocation5], %s634
        // Predicated region
        $region61: #{tpu_custom_call.1} parent=55 // pred_check
          %p636 = pneg %p271
        $region62: #{tpu_custom_call.1} parent=55 // pred_check_branch
          %638 = sbr.rel (%p636) target = $region64
        $region63: #{tpu_custom_call.1} parent=55 // pred_region
          %s640 = ssub.s32 128, 128
          %641 = vsyncadd %s632, %s640
          %s642 = sadd.s32 %s28, %s29
          %s643 = smul.addr %s642, 128
          %s644 = scalar_lea.hbm %s9, %s643
          %s646 = sshll.u32 %s635, 4
          %s647 = int_to_ptr.vmem [resolvable:$true] %s646
          %649 = dma.vmem_to_hbm [thread:$0]  %s647, 128, %s644, %s632
        $region64: #{tpu_custom_call.1} parent=55 // pred_fallthru
          _
      $region56: #{tpu_custom_call.1} parent=5 // pred_fallthru
        _
      %p650 = scmp.le.s32.totalorder 2, %s19
      // Predicated region
      $region65: #{tpu_custom_call.1} parent=5 // pred_check
        %p651 = pneg %p650
      $region66: #{tpu_custom_call.1} parent=5 // pred_check_branch
        %653 = sbr.rel (%p651) target = $region68
      $region67: #{tpu_custom_call.1} parent=5 // pred_region
        %s654 = ssub.s32 %s19, 2
        // Predicated region
        $region69: #{tpu_custom_call.1} parent=67 // pred_check
          %p655 = pneg %p277
        $region70: #{tpu_custom_call.1} parent=67 // pred_check_branch
          %657 = sbr.rel (%p655) target = $region72
        $region71: #{tpu_custom_call.1} parent=67 // pred_region
          %s658 = sand.u32 %s262, 1
          %s659 = scalar_lea.sflag [#allocation4], %s658
          %s660 = sand.u32 %s262, 1
          %s661 = smul.addr %s660, 8
          %s662 = scalar_lea.vmem [#allocation5], %s661
          %663 = dma.done %s659, 128
        $region72: #{tpu_custom_call.1} parent=67 // pred_fallthru
          _
      $region68: #{tpu_custom_call.1} parent=5 // pred_fallthru
        _
    $region6: #{tpu_custom_call.1} parent=1 // loop_footer
      %s23 = sadd.s32 1, %s19
    $region7: #{tpu_custom_call.1} parent=1 // loop_footer_branch
      %18 = sbr.rel target = $region3
    $region8: #{tpu_custom_call.1} parent=1 // loop_exit
      _
    %664 = vsyncpa [#allocation3], 1
    %s665 = scalar_lea.sflag [#allocation3], 1
    %666 = vsyncpa %s665, 1
    %667 = vsyncpa [#allocation4], 1
    %s668 = scalar_lea.sflag [#allocation4], 1
    %669 = vsyncpa %s668, 1

</llo_original>
